<compile_context>
chip_gen: v5e
topology: v5e:2x2
jax: 0.10.0
libtpu: 0.0.40
codegen_flags: <defaults>
</compile_context>

<pallas_src>
import jax
import jax.numpy as jnp
from jax import lax
from jax.experimental import pallas as pl
from jax.experimental.pallas import tpu as pltpu


# ----------------------------- tiling heuristics -----------------------------

_VMEM_BUDGET = 40 * 1024 * 1024   # stay well under v7x's 64 MiB physical VMEM
_TM_CAP = 1024                    # M-tile cap (MXU-friendly, keeps pipeline deep)
_TK_CAP = 2048                    # K-tile cap before we split the reduction


def _round_up(x, m):
    return ((x + m - 1) // m) * m


def _pick_tiles(M, K, Np, itemsize=4):
    """Pick (tm, tk) so double-buffered tiles + weights + accumulator fit VMEM."""
    # K tile: whole K if small, else the largest 128-multiple divisor <= _TK_CAP
    # (tk must divide K exactly so no garbage columns enter the accumulation).
    if K <= _TK_CAP:
        tk = K
    else:
        tk = K
        for cand in range(_TK_CAP, 127, -128):
            if K % cand == 0:
                tk = cand
                break
    # VMEM bytes: 2x x-tile (tm*tk), 2x w-tile (tk*Np), 2x out-tile (tm*Np),
    # f32 accumulator (tm*Np), bias (Np).
    fixed = itemsize * (2 * tk * Np + Np)
    per_row = itemsize * (2 * tk + 3 * Np)
    tm_max = max(8, (_VMEM_BUDGET - fixed) // per_row)
    if tm_max >= M:
        tm = M                                       # whole axis (full dim is legal)
    elif tm_max >= 256:
        tm = min(_TM_CAP, (tm_max // 256) * 256)     # MXU-friendly multiples of 256
    else:
        tm = max(8, (tm_max // 8) * 8)               # keep (8,128) alignment
    return tm, tk


# --------------------------------- kernels -----------------------------------

def _mm_bias_kernel(x_ref, w_ref, b_ref, o_ref):
    # Fast path: whole K in one tile.  x:[tm,K] w:[K,Np] b:[1,Np] o:[tm,Np]
    o_ref[...] = (jnp.dot(x_ref[...], w_ref[...],
                          preferred_element_type=jnp.float32)
                  + b_ref[...]).astype(o_ref.dtype)


def _mm_bias_acc_kernel(x_ref, w_ref, b_ref, o_ref, acc_ref):
    # K-split path: x:[tm,tk] w:[tk,Np] b:[1,Np] o:[tm,Np] acc:[tm,Np] f32
    k = pl.program_id(1)

    @pl.when(k == 0)
    def _():
        acc_ref[...] = jnp.zeros_like(acc_ref)

    acc_ref[...] += jnp.dot(x_ref[...], w_ref[...],
                            preferred_element_type=jnp.float32)

    @pl.when(k == pl.num_programs(1) - 1)
    def _():
        o_ref[...] = (acc_ref[...] + b_ref[...]).astype(o_ref.dtype)


# --------------------------------- wrapper -----------------------------------

def downsample_patches_conv(patches, conv_w, conv_b):
    """
    patches: [B, P_in, D] float32
    conv_w : [D, D, 2, 2]  (PyTorch Conv2d weight layout: [c_out, c_in, kh, kw])
    conv_b : [D]
    returns: [B, P_out, D] with P_out = P_in // 4
    """
    B, P_in, D = patches.shape
    G = int(round(P_in ** 0.5))
    assert G * G == P_in and G % 2 == 0
    Go = G // 2
    P_out = Go * Go

    # ---- glue: rearrange input into non-overlapping 2x2 blocks (one XLA copy) ----
    x = patches.reshape(B, Go, 2, Go, 2, D)              # split spatial (free view)
    x = x.transpose(0, 1, 3, 2, 4, 5)                    # [B, Go, Go, 2, 2, D]
    x = x.reshape(B * P_out, 4 * D)                      # [M, K]; K-order = (kh, kw, c_in)

    # ---- glue: conv weight -> matmul weight, padded to a lane-dense N ----
    # W[c_out, c_in, kh, kw] -> W_mat[(kh, kw, c_in), c_out]
    w_mat = conv_w.transpose(2, 3, 1, 0).reshape(4 * D, D)          # [K, D]
    M, K = x.shape
    Np = _round_up(D, 128)                                          # lane-dense N
    if Np != D:
        w_mat = jnp.pad(w_mat, ((0, 0), (0, Np - D)))
        b_mat = jnp.pad(conv_b, (0, Np - D)).reshape(1, Np)
    else:
        b_mat = conv_b.reshape(1, Np)

    tm, tk = _pick_tiles(M, K, Np)
    n_k = K // tk

    cost = pl.CostEstimate(
        flops=2 * M * K * Np,
        transcendentals=0,
        bytes_accessed=4 * (M * K + K * Np + M * Np + Np),
    )

    if n_k == 1:
        # ---------------- fast path: no K split, no accumulator -----------------
        out = pl.pallas_call(
            _mm_bias_kernel,
            out_shape=jax.ShapeDtypeStruct((M, Np), patches.dtype),
            grid_spec=pltpu.PrefetchScalarGridSpec(
                num_scalar_prefetch=0,
                grid=(pl.cdiv(M, tm),),
                in_specs=[
                    pl.BlockSpec((tm, K), lambda i: (i, 0)),    # activations tile
                    pl.BlockSpec((K, Np), lambda i: (0, 0)),    # weights (resident)
                    pl.BlockSpec((1, Np), lambda i: (0, 0)),    # bias (resident)
                ],
                out_specs=pl.BlockSpec((tm, Np), lambda i: (i, 0)),
            ),
            compiler_params=pltpu.CompilerParams(
                dimension_semantics=("parallel",),
                vmem_limit_bytes=64 * 1024 * 1024,
            ),
            cost_estimate=cost,
        )(x, w_mat, b_mat)
    else:
        # ---------------- K-split path: resident f32 accumulator ----------------
        out = pl.pallas_call(
            _mm_bias_acc_kernel,
            out_shape=jax.ShapeDtypeStruct((M, Np), patches.dtype),
            grid_spec=pltpu.PrefetchScalarGridSpec(
                num_scalar_prefetch=0,
                grid=(pl.cdiv(M, tm), n_k),
                in_specs=[
                    pl.BlockSpec((tm, tk), lambda i, k: (i, k)),   # activations tile
                    pl.BlockSpec((tk, Np), lambda i, k: (k, 0)),   # weight tile
                    pl.BlockSpec((1, Np), lambda i, k: (0, 0)),    # bias (resident)
                ],
                out_specs=pl.BlockSpec((tm, Np), lambda i, k: (i, 0)),
                scratch_shapes=[pltpu.VMEM((tm, Np), jnp.float32)],
            ),
            compiler_params=pltpu.CompilerParams(
                dimension_semantics=("parallel", "arbitrary"),
                vmem_limit_bytes=64 * 1024 * 1024,
            ),
            cost_estimate=cost,
        )(x, w_mat, b_mat)

    if Np != D:
        out = out[:, :D]
    return out.reshape(B, P_out, D)


# -------------------------------- reference ----------------------------------

def _reference_conv(patches, conv_w, conv_b):
    """Pure-JAX reference replicating the PyTorch forward exactly."""
    B, P_in, D = patches.shape
    G = int(round(P_in ** 0.5))
    x = patches.reshape(B, G, G, D).transpose(0, 3, 1, 2)        # NCHW
    y = lax.conv_general_dilated(
        x, conv_w, window_strides=(2, 2), padding="VALID",
        dimension_numbers=("NCHW", "OIHW", "NCHW"))
    y = y + conv_b.reshape(1, D, 1, 1)
    y = y.transpose(0, 2, 3, 1).reshape(B, (G // 2) ** 2, D)
    return y


if __name__ == "__main__":
    # Small shapes consistent with the module:
    # input_patch_count=16 (grid 4x4), output_patch_count=4 (grid 2x2), embed_dim=32
    B = 2
    input_patch_count = 16
    embed_dim = 32

    key = jax.random.PRNGKey(0)
    k_x, k_w, k_b = jax.random.split(key, 3)

    patches = jax.random.normal(k_x, (B, input_patch_count, embed_dim), dtype=jnp.float32)
    # Deterministic Conv2d(embed_dim, embed_dim, kernel_size=2) parameters.
    conv_w = (jax.random.normal(k_w, (embed_dim, embed_dim, 2, 2), dtype=jnp.float32)
              * (1.0 / (embed_dim * 4) ** 0.5))
    conv_b = jax.random.normal(k_b, (embed_dim,), dtype=jnp.float32) * 0.01

    out = downsample_patches_conv(patches, conv_w, conv_b)
    out = jax.block_until_ready(out)

    ref = _reference_conv(patches, conv_w, conv_b)
    assert out.shape == (B, input_patch_count // 4, embed_dim)
    assert jnp.allclose(out, ref, atol=1e-5, rtol=1e-5)

    print("KERNEL_OK")
</pallas_src>

<mosaic_0001>
module attributes {stable_mosaic.version = 11 : i64} {
  func.func @_mm_bias_kernel(%arg0: i32, %arg1: memref<8x128xf32, #tpu.memory_space<vmem>>, %arg2: memref<128x128xf32, #tpu.memory_space<vmem>>, %arg3: memref<1x128xf32, #tpu.memory_space<vmem>>, %arg4: memref<8x128xf32, #tpu.memory_space<vmem>>) attributes {dimension_semantics = [#tpu.dimension_semantics<parallel>], iteration_bounds = array<i64: 1>, scalar_prefetch = 0 : i64, scratch_operands = 0 : i64, tpu.core_type = #tpu.core_type<tc>, window_params = [{transform_indices = @transform_0, window_bounds = array<i64: 8, 128>}, {pipeline_mode = #tpu.pipeline_mode<synchronous>, transform_indices = @transform_1, window_bounds = array<i64: 128, 128>}, {pipeline_mode = #tpu.pipeline_mode<synchronous>, transform_indices = @transform_2, window_bounds = array<i64: 1, 128>}, {transform_indices = @transform_3, window_bounds = array<i64: 8, 128>}]} {
    %c0 = arith.constant 0 : index
    %c0_0 = arith.constant 0 : index
    %0 = vector.load %arg1[%c0, %c0_0] : memref<8x128xf32, #tpu.memory_space<vmem>>, vector<8x128xf32>
    %c0_1 = arith.constant 0 : index
    %c0_2 = arith.constant 0 : index
    %1 = vector.load %arg2[%c0_1, %c0_2] : memref<128x128xf32, #tpu.memory_space<vmem>>, vector<128x128xf32>
    %cst = arith.constant dense<0.000000e+00> : vector<8x128xf32>
    %2 = tpu.matmul %0, %1, %cst {dimension_numbers = #tpu.dot_dimension_numbers<[1], [0], [0], [1], [0, 0, 1, 1], [], []>} : vector<8x128xf32>, vector<128x128xf32>, vector<8x128xf32> -> vector<8x128xf32>
    %c0_3 = arith.constant 0 : index
    %c0_4 = arith.constant 0 : index
    %3 = vector.load %arg3[%c0_3, %c0_4] : memref<1x128xf32, #tpu.memory_space<vmem>>, vector<1x128xf32>
    %4 = vector.broadcast %3 : vector<1x128xf32> to vector<8x128xf32>
    %5 = arith.addf %2, %4 : vector<8x128xf32>
    %c0_5 = arith.constant 0 : index
    %c0_6 = arith.constant 0 : index
    %6 = vector.load %arg4[%c0_5, %c0_6] : memref<8x128xf32, #tpu.memory_space<vmem>>, vector<8x128xf32>
    tpu.vector_store %arg4[%c0_5, %c0_6], %5 {strides = array<i32>} : memref<8x128xf32, #tpu.memory_space<vmem>>, vector<8x128xf32>,
    return
  }
  func.func @transform_0(%arg0: i32) -> (i32, i32) {
    %c0_i32 = arith.constant 0 : i32
    %c0_i32_0 = arith.constant 0 : i32
    return %arg0, %c0_i32 : i32, i32
  }
  func.func @transform_1(%arg0: i32) -> (i32, i32) {
    %c0_i32 = arith.constant 0 : i32
    %c0_i32_0 = arith.constant 0 : i32
    %c0_i32_1 = arith.constant 0 : i32
    return %c0_i32, %c0_i32_0 : i32, i32
  }
  func.func @transform_2(%arg0: i32) -> (i32, i32) {
    %c0_i32 = arith.constant 0 : i32
    %c0_i32_0 = arith.constant 0 : i32
    %c0_i32_1 = arith.constant 0 : i32
    return %c0_i32, %c0_i32_0 : i32, i32
  }
  func.func @transform_3(%arg0: i32) -> (i32, i32) {
    %c0_i32 = arith.constant 0 : i32
    %c0_i32_0 = arith.constant 0 : i32
    return %arg0, %c0_i32 : i32, i32
  }
}

</mosaic_0001>

<llo_original>
// kernel: tpu_custom_call.1
$region0: #{tpu_custom_call.1}
  #allocation0 [shape = 'u32[]', space=smem, size = 0x4, offset = 0x4, fixed_abs, tag = 'smem constant byte address 0x4 - core index']
  #allocation1 [shape = 'u32[72,128]{1,0:T(1,128)}', space=vmem, size = 0x9000, scoped, tag = 'internal scratch']
  %s0 = inlined_call_operand.hbm [shape: f32[8,128], index: 0, kind: input, shape index: {}]
  %s1 = inlined_call_operand.hbm [shape: f32[128,128], index: 1, kind: input, shape index: {}]
  %s2 = inlined_call_operand.vmem [shape: f32[1,128], index: 2, kind: input, shape index: {}]
  %s3 = inlined_call_operand.hbm [shape: f32[8,128], index: 3, kind: output, shape index: {}]
  %s4 = sld [smem:[#allocation0]]
  $region30: #{tpu_custom_call.1} parent=0
    _
  %s6 = ssub.s32 1, %s4
  %s7 = scalar_select 0, %s6, %s4
  $region1: #{tpu_custom_call.1} parent=0
    #allocation2 [shape = 'u8[4096]{0}', space=vmem, size = 0x1000, scoped, tag = 'input window, operand 0, single buffered']
    #allocation3 [shape = 's32[1]{0}', space=sflag, size = 0x4, scoped, tag = 'scoped memory for tpu_custom_call.1']
    #allocation4 [shape = 's32[1]{0}', space=sflag, size = 0x4, scoped, tag = 'scoped memory for tpu_custom_call.1']
    #allocation5 [shape = 'u8[65536]{0}', space=vmem, size = 0x10000, scoped, tag = 'input window, operand 1, single buffered']
    #allocation6 [shape = 's32[1]{0}', space=sflag, size = 0x4, scoped, tag = 'scoped memory for tpu_custom_call.1']
    #allocation7 [shape = 'u8[4096]{0}', space=vmem, size = 0x1000, scoped, tag = 'output window, operand 0, single buffered']
    %8 = vsyncpa [#allocation3], 0
    %9 = vsyncpa [#allocation6], 0
    %10 = vsyncpa [#allocation4], 0
    // Predicated region
    $region2: #{tpu_custom_call.1} parent=1 // pred_check
      _
    $region3: #{tpu_custom_call.1} parent=1 // pred_check_branch
      %12 = sbr.rel (0) target = $region5
    $region4: #{tpu_custom_call.1} parent=1 // pred_region
      %14 = vsyncadd [#allocation3], 0
      %s16 = sshll.u32 %s0, 4
      %s17 = int_to_ptr.hbm [resolvable:$true] %s16
      %s18 = sshll.u32 [#allocation2], 4
      %s19 = int_to_ptr.vmem [resolvable:$true] %s18
      %21 = dma.hbm_to_vmem [thread:$0]  %s17, 128, %s19, [#allocation3]
    $region5: #{tpu_custom_call.1} parent=1 // pred_fallthru
      _
    // Predicated region
    $region6: #{tpu_custom_call.1} parent=1 // pred_check
      _
    $region7: #{tpu_custom_call.1} parent=1 // pred_check_branch
      %23 = sbr.rel (0) target = $region9
    $region8: #{tpu_custom_call.1} parent=1 // pred_region
      %25 = vsyncadd [#allocation6], 0
      %s26 = sshll.u32 %s1, 4
      %s27 = int_to_ptr.hbm [resolvable:$true] %s26
      %s28 = sshll.u32 [#allocation5], 4
      %s29 = int_to_ptr.vmem [resolvable:$true] %s28
      %34 = dma.hbm_to_vmem [thread:$0]  %s27, 2048, %s29, [#allocation6], 128, 128, 8
    $region9: #{tpu_custom_call.1} parent=1 // pred_fallthru
      _
    // Predicated region
    $region10: #{tpu_custom_call.1} parent=1 // pred_check
      _
    $region11: #{tpu_custom_call.1} parent=1 // pred_check_branch
      %36 = sbr.rel (0) target = $region13
    $region12: #{tpu_custom_call.1} parent=1 // pred_region
      _
    $region13: #{tpu_custom_call.1} parent=1 // pred_fallthru
      _
    // Predicated region
    $region14: #{tpu_custom_call.1} parent=1 // pred_check
      _
    $region15: #{tpu_custom_call.1} parent=1 // pred_check_branch
      %38 = sbr.rel (0) target = $region17
    $region16: #{tpu_custom_call.1} parent=1 // pred_region
      %40 = dma.done [#allocation3], 128
    $region17: #{tpu_custom_call.1} parent=1 // pred_fallthru
      _
    // Predicated region
    $region18: #{tpu_custom_call.1} parent=1 // pred_check
      _
    $region19: #{tpu_custom_call.1} parent=1 // pred_check_branch
      %42 = sbr.rel (0) target = $region21
    $region20: #{tpu_custom_call.1} parent=1 // pred_region
      %44 = dma.done [#allocation6], 2048
    $region21: #{tpu_custom_call.1} parent=1 // pred_fallthru
      _
    %v45 = vld [vmem:[#allocation2] sm:$0xff]
    %v46 = vld [vmem:[#allocation5] sm:$0xff]
    %v47 = vld [vmem:[#allocation5 + $0x8] sm:$0xff]
    %v48 = vld [vmem:[#allocation5 + $0x10] sm:$0xff]
    %v49 = vld [vmem:[#allocation5 + $0x18] sm:$0xff]
    %v50 = vld [vmem:[#allocation5 + $0x20] sm:$0xff]
    %v51 = vld [vmem:[#allocation5 + $0x28] sm:$0xff]
    %v52 = vld [vmem:[#allocation5 + $0x30] sm:$0xff]
    %v53 = vld [vmem:[#allocation5 + $0x38] sm:$0xff]
    %v54 = vld [vmem:[#allocation5 + $0x40] sm:$0xff]
    %v55 = vld [vmem:[#allocation5 + $0x48] sm:$0xff]
    %v56 = vld [vmem:[#allocation5 + $0x50] sm:$0xff]
    %v57 = vld [vmem:[#allocation5 + $0x58] sm:$0xff]
    %v58 = vld [vmem:[#allocation5 + $0x60] sm:$0xff]
    %v59 = vld [vmem:[#allocation5 + $0x68] sm:$0xff]
    %v60 = vld [vmem:[#allocation5 + $0x70] sm:$0xff]
    %v61 = vld [vmem:[#allocation5 + $0x78] sm:$0xff]
    %v62 = vld [vmem:[%s2] sm:$0x1]
    %v64 = vperm.slane %v62, 0
    %66 = vmatpush.msra.mxu0 %v61
    %67 = vmatpush.msra.mxu0 %v60
    %68 = vmatpush.msra.mxu0 %v59
    %69 = vmatpush.msra.mxu0 %v58
    %70 = vmatpush.msra.mxu0 %v57
    %71 = vmatpush.msra.mxu0 %v56
    %72 = vmatpush.msra.mxu0 %v55
    %73 = vmatpush.msra.mxu0 %v54
    %74 = vmatpush.msra.mxu0 %v53
    %75 = vmatpush.msra.mxu0 %v52
    %76 = vmatpush.msra.mxu0 %v51
    %77 = vmatpush.msra.mxu0 %v50
    %78 = vmatpush.msra.mxu0 %v49
    %79 = vmatpush.msra.mxu0 %v48
    %80 = vmatpush.msra.mxu0 %v47
    %81 = vmatpush.msra.mxu0 %v46
    %82 = vmatmul.f32.gmra.mxu0 %v45
    %v83 = vpop.f32.mrf.mxu0
    %v84 = vadd.f32 %v64, %v83
    %85 = vdwg.mxu0
    %86 = vst [vmem:[#allocation7] sm:$0xff] %v84
    // Predicated region
    $region22: #{tpu_custom_call.1} parent=1 // pred_check
      _
    $region23: #{tpu_custom_call.1} parent=1 // pred_check_branch
      %88 = sbr.rel (0) target = $region25
    $region24: #{tpu_custom_call.1} parent=1 // pred_region
      %90 = vsyncadd [#allocation4], 0
      %s92 = sshll.u32 [#allocation7], 4
      %s93 = int_to_ptr.vmem [resolvable:$true] %s92
      %s94 = sshll.u32 %s3, 4
      %s95 = int_to_ptr.hbm [resolvable:$true] %s94
      %97 = dma.vmem_to_hbm [thread:$0]  %s93, 128, %s95, [#allocation4]
    $region25: #{tpu_custom_call.1} parent=1 // pred_fallthru
      _
    // Predicated region
    $region26: #{tpu_custom_call.1} parent=1 // pred_check
      _
    $region27: #{tpu_custom_call.1} parent=1 // pred_check_branch
      %99 = sbr.rel (0) target = $region29
    $region28: #{tpu_custom_call.1} parent=1 // pred_region
      %101 = dma.done [#allocation4], 128
    $region29: #{tpu_custom_call.1} parent=1 // pred_fallthru
      _
    %102 = vsyncpa [#allocation3], 1
    %103 = vsyncpa [#allocation6], 1
    %104 = vsyncpa [#allocation4], 1

</llo_original>
